<compile_context>
chip_gen: v6e
topology: v6e:2x2x1
jax: 0.10.0
libtpu: 0.0.40
codegen_flags: <defaults>
</compile_context>

<pallas_src>
import math
import jax
import jax.numpy as jnp
from jax.experimental import pallas as pl
from jax.experimental.pallas import tpu as pltpu


def fnn_kernel(x_ref, w1_ref, b1_ref,
               r1wa_ref, r1ba_ref, r1wb_ref, r1bb_ref,
               r2wa_ref, r2ba_ref, r2wb_ref, r2bb_ref,
               wo_ref, bo_ref, out_ref):
    f32 = jnp.float32
    bf16 = jnp.bfloat16

    # x arrives in its native f32; cast on the VPU (free filler) instead of a
    # separate wrapper-side HBM pass.
    x = x_ref[...].astype(bf16)                                 # (tile_b, F)

    # layer 0: Linear(F -> H) + ReLU   (bf16 operands, f32 MXU accumulation)
    h = jnp.dot(x, w1_ref[...], preferred_element_type=f32) + b1_ref[...]
    h = jnp.maximum(h, 0.0)                                     # f32 (tile_b, H)

    # BlkTwoLayerRes #1: h + Lin_b(ReLU(Lin_a(h))), then the Sequential's ReLU
    t = jnp.dot(h.astype(bf16), r1wa_ref[...], preferred_element_type=f32) + r1ba_ref[...]
    t = jnp.maximum(t, 0.0)
    t = jnp.dot(t.astype(bf16), r1wb_ref[...], preferred_element_type=f32) + r1bb_ref[...]
    h = jnp.maximum(h + t, 0.0)

    # BlkTwoLayerRes #2
    t = jnp.dot(h.astype(bf16), r2wa_ref[...], preferred_element_type=f32) + r2ba_ref[...]
    t = jnp.maximum(t, 0.0)
    t = jnp.dot(t.astype(bf16), r2wb_ref[...], preferred_element_type=f32) + r2bb_ref[...]
    h = jnp.maximum(h + t, 0.0)

    # head: Linear(H -> Cp), Cp lane-padded to a multiple of 128 -> unmasked
    # stores; accumulate in f32, store bf16.
    out_ref[...] = (jnp.dot(h.astype(bf16), wo_ref[...], preferred_element_type=f32)
                    + bo_ref[...]).astype(out_ref.dtype)


def _round_up(x, m):
    return pl.cdiv(x, m) * m


def _pick_tile_b(B, target):
    """Batch tile: big (amortize ~0.35us/grid-step), sublane-aligned, preferring
    (a) a divisor of B so there is no ragged tail and (b) >= 2 grid steps so
    both v7x TensorCores are used when the batch allows it."""
    target = max(8, (int(target) // 8) * 8)
    if B <= target:
        half = B // 2
        if half >= 8 and half % 8 == 0:
            return half                       # 2 grid steps for v7x's 2 TCs
        return B                              # single block == full array dim (always legal)
    # B > target: search downward from the large target for a divisor of B.
    for cand in range(target, target // 2 - 1, -8):
        if B % cand == 0:
            return cand
    return target                             # ragged tail handled by Pallas masking


def fnn_forward(x_nchw, params, *, tile_b=1024):
    """params = (w1,b1, r1wa,r1ba,r1wb,r1bb, r2wa,r2ba,r2wb,r2bb, wo,bo).
    Weights are (in_dim, out_dim) (transposed vs. PyTorch), biases (1, out_dim).
    Returns bf16 logits of shape (B, C) (f32-accumulated, bf16-stored)."""
    (w1, b1, r1wa, r1ba, r1wb, r1bb, r2wa, r2ba, r2wb, r2bb, wo, bo) = params

    B = x_nchw.shape[0]
    F = int(math.prod(x_nchw.shape[1:]))
    H = w1.shape[1]
    C = wo.shape[1]
    Cp = _round_up(C, 128)          # lane-dense head output (unmasked stores)

    # VMEM guard: keep double-buffered x/out tiles + f32 temps comfortably under
    # the 32 MiB default scoped limit (v7x physical VMEM is only 64 MiB).
    bytes_per_row = F * 4 * 2 + Cp * 2 * 2 + H * 4 * 4
    tile_b = min(int(tile_b), max(8, ((24 << 20) // bytes_per_row) // 8 * 8))
    tile_b = _pick_tile_b(B, tile_b)
    grid = (pl.cdiv(B, tile_b),)

    # nn.Flatten only -- no dtype cast, no batch padding in the wrapper
    # (either would be an extra full HBM pass over x).
    x = x_nchw.reshape(B, F)

    bf = lambda a: a.astype(jnp.bfloat16)
    w1, r1wa, r1wb, r2wa, r2wb = map(bf, (w1, r1wa, r1wb, r2wa, r2wb))
    wo = jnp.pad(bf(wo), ((0, 0), (0, Cp - C)))
    bo = jnp.pad(bo.astype(jnp.float32), ((0, 0), (0, Cp - C)))
    b1, r1ba, r1bb, r2ba, r2bb = (a.astype(jnp.float32)
                                  for a in (b1, r1ba, r1bb, r2ba, r2bb))

    def replicated(a):
        # whole array, same block every grid step -> DMA'd once, stays resident.
        return pl.BlockSpec(a.shape, lambda i: (0,) * a.ndim)

    out = pl.pallas_call(
        fnn_kernel,
        out_shape=jax.ShapeDtypeStruct((B, Cp), jnp.bfloat16),
        grid=grid,
        in_specs=[pl.BlockSpec((tile_b, F), lambda i: (i, 0)),
                  replicated(w1), replicated(b1),
                  replicated(r1wa), replicated(r1ba),
                  replicated(r1wb), replicated(r1bb),
                  replicated(r2wa), replicated(r2ba),
                  replicated(r2wb), replicated(r2bb),
                  replicated(wo), replicated(bo)],
        out_specs=pl.BlockSpec((tile_b, Cp), lambda i: (i, 0)),
        compiler_params=pltpu.CompilerParams(dimension_semantics=("parallel",)),
    )(x, w1, b1, r1wa, r1ba, r1wb, r1bb, r2wa, r2ba, r2wb, r2bb, wo, bo)

    return out[:, :C]


def init_linear(key, in_dim, out_dim):
    """PyTorch nn.Linear default init: U(-1/sqrt(fan_in), 1/sqrt(fan_in)).
    Returns W as (in_dim, out_dim) and b as (1, out_dim), both f32."""
    kw, kb = jax.random.split(key)
    bound = 1.0 / math.sqrt(in_dim)
    w = jax.random.uniform(kw, (in_dim, out_dim), jnp.float32, -bound, bound)
    b = jax.random.uniform(kb, (1, out_dim), jnp.float32, -bound, bound)
    return w, b


def reference_forward(x_nchw, params):
    """Pure-JAX reference emulating the kernel's bf16-operand / f32-accumulate math."""
    (w1, b1, r1wa, r1ba, r1wb, r1bb, r2wa, r2ba, r2wb, r2bb, wo, bo) = params
    bf16, f32 = jnp.bfloat16, jnp.float32
    dot = lambda a, w: jnp.dot(a.astype(bf16), w.astype(bf16),
                               preferred_element_type=f32)
    B = x_nchw.shape[0]
    x = x_nchw.reshape(B, -1)
    h = jnp.maximum(dot(x, w1) + b1, 0.0)
    t = jnp.maximum(dot(h, r1wa) + r1ba, 0.0)
    t = dot(t, r1wb) + r1bb
    h = jnp.maximum(h + t, 0.0)
    t = jnp.maximum(dot(h, r2wa) + r2ba, 0.0)
    t = dot(t, r2wb) + r2bb
    h = jnp.maximum(h + t, 0.0)
    return dot(h, wo) + bo


if __name__ == "__main__":
    # Small shapes consistent with the module: NCHW input, flat_indim = C*H*W.
    B, Cc, Hs, Ws = 2, 1, 16, 16
    flat_indim = Cc * Hs * Ws          # 256
    hid_dim = 128
    class_dim = 10

    root = jax.random.PRNGKey(0)
    kx, k1, k2, k3, k4, k5, k6, kx2 = jax.random.split(root, 8)

    x = jax.random.normal(kx, (B, Cc, Hs, Ws), jnp.float32)

    w1, b1 = init_linear(k1, flat_indim, hid_dim)        # linear_one
    r1wa, r1ba = init_linear(k2, hid_dim, hid_dim)       # res block 1, lin a
    r1wb, r1bb = init_linear(k3, hid_dim, hid_dim)       # res block 1, lin b
    r2wa, r2ba = init_linear(k4, hid_dim, hid_dim)       # res block 2, lin a
    r2wb, r2bb = init_linear(k5, hid_dim, hid_dim)       # res block 2, lin b
    wo, bo = init_linear(k6, hid_dim, class_dim)         # head

    params = (w1, b1, r1wa, r1ba, r1wb, r1bb,
              r2wa, r2ba, r2wb, r2bb, wo, bo)

    # --- main small-shape check (B=2, single full-array block, no padding) ---
    logits = fnn_forward(x, params)
    jax.block_until_ready(logits)

    ref = reference_forward(x, params).astype(jnp.bfloat16)
    assert logits.shape == (B, class_dim)
    assert logits.dtype == jnp.bfloat16
    assert jnp.allclose(logits.astype(jnp.float32), ref.astype(jnp.float32),
                        atol=5e-2, rtol=5e-2), (
        float(jnp.max(jnp.abs(logits.astype(jnp.float32) - ref.astype(jnp.float32)))))

    # --- ragged-tail check: tile does not divide B, no wrapper-side padding ---
    B2 = 20
    x2 = jax.random.normal(kx2, (B2, Cc, Hs, Ws), jnp.float32)
    logits2 = fnn_forward(x2, params, tile_b=16)         # grid=2, last tile ragged
    jax.block_until_ready(logits2)
    ref2 = reference_forward(x2, params).astype(jnp.bfloat16)
    assert logits2.shape == (B2, class_dim)
    assert jnp.allclose(logits2.astype(jnp.float32), ref2.astype(jnp.float32),
                        atol=5e-2, rtol=5e-2), (
        float(jnp.max(jnp.abs(logits2.astype(jnp.float32) - ref2.astype(jnp.float32)))))

    print("KERNEL_OK")
</pallas_src>

<mosaic_0001>
module attributes {stable_mosaic.version = 11 : i64} {
  func.func @fnn_kernel(%arg0: i32, %arg1: memref<2x256xf32, #tpu.memory_space<vmem>>, %arg2: memref<256x128xbf16, #tpu.memory_space<vmem>>, %arg3: memref<1x128xf32, #tpu.memory_space<vmem>>, %arg4: memref<128x128xbf16, #tpu.memory_space<vmem>>, %arg5: memref<1x128xf32, #tpu.memory_space<vmem>>, %arg6: memref<128x128xbf16, #tpu.memory_space<vmem>>, %arg7: memref<1x128xf32, #tpu.memory_space<vmem>>, %arg8: memref<128x128xbf16, #tpu.memory_space<vmem>>, %arg9: memref<1x128xf32, #tpu.memory_space<vmem>>, %arg10: memref<128x128xbf16, #tpu.memory_space<vmem>>, %arg11: memref<1x128xf32, #tpu.memory_space<vmem>>, %arg12: memref<128x128xbf16, #tpu.memory_space<vmem>>, %arg13: memref<1x128xf32, #tpu.memory_space<vmem>>, %arg14: memref<2x128xbf16, #tpu.memory_space<vmem>>) attributes {dimension_semantics = [#tpu.dimension_semantics<parallel>], iteration_bounds = array<i64: 1>, scalar_prefetch = 0 : i64, scratch_operands = 0 : i64, tpu.core_type = #tpu.core_type<tc>, window_params = [{transform_indices = @transform_0, window_bounds = array<i64: 2, 256>}, {pipeline_mode = #tpu.pipeline_mode<synchronous>, transform_indices = @transform_1, window_bounds = array<i64: 256, 128>}, {pipeline_mode = #tpu.pipeline_mode<synchronous>, transform_indices = @transform_2, window_bounds = array<i64: 1, 128>}, {pipeline_mode = #tpu.pipeline_mode<synchronous>, transform_indices = @transform_3, window_bounds = array<i64: 128, 128>}, {pipeline_mode = #tpu.pipeline_mode<synchronous>, transform_indices = @transform_4, window_bounds = array<i64: 1, 128>}, {pipeline_mode = #tpu.pipeline_mode<synchronous>, transform_indices = @transform_5, window_bounds = array<i64: 128, 128>}, {pipeline_mode = #tpu.pipeline_mode<synchronous>, transform_indices = @transform_6, window_bounds = array<i64: 1, 128>}, {pipeline_mode = #tpu.pipeline_mode<synchronous>, transform_indices = @transform_7, window_bounds = array<i64: 128, 128>}, {pipeline_mode = #tpu.pipeline_mode<synchronous>, transform_indices = @transform_8, window_bounds = array<i64: 1, 128>}, {pipeline_mode = #tpu.pipeline_mode<synchronous>, transform_indices = @transform_9, window_bounds = array<i64: 128, 128>}, {pipeline_mode = #tpu.pipeline_mode<synchronous>, transform_indices = @transform_10, window_bounds = array<i64: 1, 128>}, {pipeline_mode = #tpu.pipeline_mode<synchronous>, transform_indices = @transform_11, window_bounds = array<i64: 128, 128>}, {pipeline_mode = #tpu.pipeline_mode<synchronous>, transform_indices = @transform_12, window_bounds = array<i64: 1, 128>}, {transform_indices = @transform_13, window_bounds = array<i64: 2, 128>}]} {
    %c0 = arith.constant 0 : index
    %c0_0 = arith.constant 0 : index
    %0 = vector.load %arg1[%c0, %c0_0] : memref<2x256xf32, #tpu.memory_space<vmem>>, vector<2x256xf32>
    %1 = arith.truncf %0 : vector<2x256xf32> to vector<2x256xbf16>
    %c0_1 = arith.constant 0 : index
    %c0_2 = arith.constant 0 : index
    %2 = vector.load %arg2[%c0_1, %c0_2] : memref<256x128xbf16, #tpu.memory_space<vmem>>, vector<256x128xbf16>
    %cst = arith.constant dense<0.000000e+00> : vector<2x128xf32>
    %3 = tpu.matmul %1, %2, %cst {dimension_numbers = #tpu.dot_dimension_numbers<[1], [0], [0], [1], [0, 0, 1, 1], [], []>} : vector<2x256xbf16>, vector<256x128xbf16>, vector<2x128xf32> -> vector<2x128xf32>
    %c0_3 = arith.constant 0 : index
    %c0_4 = arith.constant 0 : index
    %4 = vector.load %arg3[%c0_3, %c0_4] : memref<1x128xf32, #tpu.memory_space<vmem>>, vector<1x128xf32>
    %5 = vector.broadcast %4 : vector<1x128xf32> to vector<2x128xf32>
    %6 = arith.addf %3, %5 : vector<2x128xf32>
    %cst_5 = arith.constant 0.000000e+00 : f32
    %7 = vector.broadcast %cst_5 : f32 to vector<2x128xf32>
    %8 = arith.maximumf %6, %7 : vector<2x128xf32>
    %9 = arith.truncf %8 : vector<2x128xf32> to vector<2x128xbf16>
    %c0_6 = arith.constant 0 : index
    %c0_7 = arith.constant 0 : index
    %10 = vector.load %arg4[%c0_6, %c0_7] : memref<128x128xbf16, #tpu.memory_space<vmem>>, vector<128x128xbf16>
    %cst_8 = arith.constant dense<0.000000e+00> : vector<2x128xf32>
    %11 = tpu.matmul %9, %10, %cst_8 {dimension_numbers = #tpu.dot_dimension_numbers<[1], [0], [0], [1], [0, 0, 1, 1], [], []>} : vector<2x128xbf16>, vector<128x128xbf16>, vector<2x128xf32> -> vector<2x128xf32>
    %c0_9 = arith.constant 0 : index
    %c0_10 = arith.constant 0 : index
    %12 = vector.load %arg5[%c0_9, %c0_10] : memref<1x128xf32, #tpu.memory_space<vmem>>, vector<1x128xf32>
    %13 = vector.broadcast %12 : vector<1x128xf32> to vector<2x128xf32>
    %14 = arith.addf %11, %13 : vector<2x128xf32>
    %cst_11 = arith.constant 0.000000e+00 : f32
    %15 = vector.broadcast %cst_11 : f32 to vector<2x128xf32>
    %16 = arith.maximumf %14, %15 : vector<2x128xf32>
    %17 = arith.truncf %16 : vector<2x128xf32> to vector<2x128xbf16>
    %c0_12 = arith.constant 0 : index
    %c0_13 = arith.constant 0 : index
    %18 = vector.load %arg6[%c0_12, %c0_13] : memref<128x128xbf16, #tpu.memory_space<vmem>>, vector<128x128xbf16>
    %cst_14 = arith.constant dense<0.000000e+00> : vector<2x128xf32>
    %19 = tpu.matmul %17, %18, %cst_14 {dimension_numbers = #tpu.dot_dimension_numbers<[1], [0], [0], [1], [0, 0, 1, 1], [], []>} : vector<2x128xbf16>, vector<128x128xbf16>, vector<2x128xf32> -> vector<2x128xf32>
    %c0_15 = arith.constant 0 : index
    %c0_16 = arith.constant 0 : index
    %20 = vector.load %arg7[%c0_15, %c0_16] : memref<1x128xf32, #tpu.memory_space<vmem>>, vector<1x128xf32>
    %21 = vector.broadcast %20 : vector<1x128xf32> to vector<2x128xf32>
    %22 = arith.addf %19, %21 : vector<2x128xf32>
    %23 = arith.addf %8, %22 : vector<2x128xf32>
    %cst_17 = arith.constant 0.000000e+00 : f32
    %24 = vector.broadcast %cst_17 : f32 to vector<2x128xf32>
    %25 = arith.maximumf %23, %24 : vector<2x128xf32>
    %26 = arith.truncf %25 : vector<2x128xf32> to vector<2x128xbf16>
    %c0_18 = arith.constant 0 : index
    %c0_19 = arith.constant 0 : index
    %27 = vector.load %arg8[%c0_18, %c0_19] : memref<128x128xbf16, #tpu.memory_space<vmem>>, vector<128x128xbf16>
    %cst_20 = arith.constant dense<0.000000e+00> : vector<2x128xf32>
    %28 = tpu.matmul %26, %27, %cst_20 {dimension_numbers = #tpu.dot_dimension_numbers<[1], [0], [0], [1], [0, 0, 1, 1], [], []>} : vector<2x128xbf16>, vector<128x128xbf16>, vector<2x128xf32> -> vector<2x128xf32>
    %c0_21 = arith.constant 0 : index
    %c0_22 = arith.constant 0 : index
    %29 = vector.load %arg9[%c0_21, %c0_22] : memref<1x128xf32, #tpu.memory_space<vmem>>, vector<1x128xf32>
    %30 = vector.broadcast %29 : vector<1x128xf32> to vector<2x128xf32>
    %31 = arith.addf %28, %30 : vector<2x128xf32>
    %cst_23 = arith.constant 0.000000e+00 : f32
    %32 = vector.broadcast %cst_23 : f32 to vector<2x128xf32>
    %33 = arith.maximumf %31, %32 : vector<2x128xf32>
    %34 = arith.truncf %33 : vector<2x128xf32> to vector<2x128xbf16>
    %c0_24 = arith.constant 0 : index
    %c0_25 = arith.constant 0 : index
    %35 = vector.load %arg10[%c0_24, %c0_25] : memref<128x128xbf16, #tpu.memory_space<vmem>>, vector<128x128xbf16>
    %cst_26 = arith.constant dense<0.000000e+00> : vector<2x128xf32>
    %36 = tpu.matmul %34, %35, %cst_26 {dimension_numbers = #tpu.dot_dimension_numbers<[1], [0], [0], [1], [0, 0, 1, 1], [], []>} : vector<2x128xbf16>, vector<128x128xbf16>, vector<2x128xf32> -> vector<2x128xf32>
    %c0_27 = arith.constant 0 : index
    %c0_28 = arith.constant 0 : index
    %37 = vector.load %arg11[%c0_27, %c0_28] : memref<1x128xf32, #tpu.memory_space<vmem>>, vector<1x128xf32>
    %38 = vector.broadcast %37 : vector<1x128xf32> to vector<2x128xf32>
    %39 = arith.addf %36, %38 : vector<2x128xf32>
    %40 = arith.addf %25, %39 : vector<2x128xf32>
    %cst_29 = arith.constant 0.000000e+00 : f32
    %41 = vector.broadcast %cst_29 : f32 to vector<2x128xf32>
    %42 = arith.maximumf %40, %41 : vector<2x128xf32>
    %43 = arith.truncf %42 : vector<2x128xf32> to vector<2x128xbf16>
    %c0_30 = arith.constant 0 : index
    %c0_31 = arith.constant 0 : index
    %44 = vector.load %arg12[%c0_30, %c0_31] : memref<128x128xbf16, #tpu.memory_space<vmem>>, vector<128x128xbf16>
    %cst_32 = arith.constant dense<0.000000e+00> : vector<2x128xf32>
    %45 = tpu.matmul %43, %44, %cst_32 {dimension_numbers = #tpu.dot_dimension_numbers<[1], [0], [0], [1], [0, 0, 1, 1], [], []>} : vector<2x128xbf16>, vector<128x128xbf16>, vector<2x128xf32> -> vector<2x128xf32>
    %c0_33 = arith.constant 0 : index
    %c0_34 = arith.constant 0 : index
    %46 = vector.load %arg13[%c0_33, %c0_34] : memref<1x128xf32, #tpu.memory_space<vmem>>, vector<1x128xf32>
    %47 = vector.broadcast %46 : vector<1x128xf32> to vector<2x128xf32>
    %48 = arith.addf %45, %47 : vector<2x128xf32>
    %49 = arith.truncf %48 : vector<2x128xf32> to vector<2x128xbf16>
    %c0_35 = arith.constant 0 : index
    %c0_36 = arith.constant 0 : index
    %50 = vector.load %arg14[%c0_35, %c0_36] : memref<2x128xbf16, #tpu.memory_space<vmem>>, vector<2x128xbf16>
    tpu.vector_store %arg14[%c0_35, %c0_36], %49 {strides = array<i32>} : memref<2x128xbf16, #tpu.memory_space<vmem>>, vector<2x128xbf16>,
    return
  }
  func.func @transform_0(%arg0: i32) -> (i32, i32) {
    %c0_i32 = arith.constant 0 : i32
    %c0_i32_0 = arith.constant 0 : i32
    return %arg0, %c0_i32 : i32, i32
  }
  func.func @transform_1(%arg0: i32) -> (i32, i32) {
    %c0_i32 = arith.constant 0 : i32
    %c0_i32_0 = arith.constant 0 : i32
    %c0_i32_1 = arith.constant 0 : i32
    return %c0_i32, %c0_i32_0 : i32, i32
  }
  func.func @transform_2(%arg0: i32) -> (i32, i32) {
    %c0_i32 = arith.constant 0 : i32
    %c0_i32_0 = arith.constant 0 : i32
    %c0_i32_1 = arith.constant 0 : i32
    return %c0_i32, %c0_i32_0 : i32, i32
  }
  func.func @transform_3(%arg0: i32) -> (i32, i32) {
    %c0_i32 = arith.constant 0 : i32
    %c0_i32_0 = arith.constant 0 : i32
    %c0_i32_1 = arith.constant 0 : i32
    return %c0_i32, %c0_i32_0 : i32, i32
  }
  func.func @transform_4(%arg0: i32) -> (i32, i32) {
    %c0_i32 = arith.constant 0 : i32
    %c0_i32_0 = arith.constant 0 : i32
    %c0_i32_1 = arith.constant 0 : i32
    return %c0_i32, %c0_i32_0 : i32, i32
  }
  func.func @transform_5(%arg0: i32) -> (i32, i32) {
    %c0_i32 = arith.constant 0 : i32
    %c0_i32_0 = arith.constant 0 : i32
    %c0_i32_1 = arith.constant 0 : i32
    return %c0_i32, %c0_i32_0 : i32, i32
  }
  func.func @transform_6(%arg0: i32) -> (i32, i32) {
    %c0_i32 = arith.constant 0 : i32
    %c0_i32_0 = arith.constant 0 : i32
    %c0_i32_1 = arith.constant 0 : i32
    return %c0_i32, %c0_i32_0 : i32, i32
  }
  func.func @transform_7(%arg0: i32) -> (i32, i32) {
    %c0_i32 = arith.constant 0 : i32
    %c0_i32_0 = arith.constant 0 : i32
    %c0_i32_1 = arith.constant 0 : i32
    return %c0_i32, %c0_i32_0 : i32, i32
  }
  func.func @transform_8(%arg0: i32) -> (i32, i32) {
    %c0_i32 = arith.constant 0 : i32
    %c0_i32_0 = arith.constant 0 : i32
    %c0_i32_1 = arith.constant 0 : i32
    return %c0_i32, %c0_i32_0 : i32, i32
  }
  func.func @transform_9(%arg0: i32) -> (i32, i32) {
    %c0_i32 = arith.constant 0 : i32
    %c0_i32_0 = arith.constant 0 : i32
    %c0_i32_1 = arith.constant 0 : i32
    return %c0_i32, %c0_i32_0 : i32, i32
  }
  func.func @transform_10(%arg0: i32) -> (i32, i32) {
    %c0_i32 = arith.constant 0 : i32
    %c0_i32_0 = arith.constant 0 : i32
    %c0_i32_1 = arith.constant 0 : i32
    return %c0_i32, %c0_i32_0 : i32, i32
  }
  func.func @transform_11(%arg0: i32) -> (i32, i32) {
    %c0_i32 = arith.constant 0 : i32
    %c0_i32_0 = arith.constant 0 : i32
    %c0_i32_1 = arith.constant 0 : i32
    return %c0_i32, %c0_i32_0 : i32, i32
  }
  func.func @transform_12(%arg0: i32) -> (i32, i32) {
    %c0_i32 = arith.constant 0 : i32
    %c0_i32_0 = arith.constant 0 : i32
    %c0_i32_1 = arith.constant 0 : i32
    return %c0_i32, %c0_i32_0 : i32, i32
  }
  func.func @transform_13(%arg0: i32) -> (i32, i32) {
    %c0_i32 = arith.constant 0 : i32
    %c0_i32_0 = arith.constant 0 : i32
    return %arg0, %c0_i32 : i32, i32
  }
}

</mosaic_0001>

<llo_original>
// kernel: tpu_custom_call.1
$region0: #{tpu_custom_call.1}
  #allocation0 [shape = 'u32[]', space=smem, size = 0x4, offset = 0x4, fixed_abs, tag = 'smem constant byte address 0x4 - core index']
  #allocation1 [shape = 'u32[144,128]{1,0:T(1,128)}', space=vmem, size = 0x12000, scoped, tag = 'internal scratch']
  %s0 = inlined_call_operand.hbm [shape: f32[2,256], index: 0, kind: input, shape index: {}]
  %s1 = inlined_call_operand.hbm [shape: bf16[256,128], index: 1, kind: input, shape index: {}]
  %s2 = inlined_call_operand.vmem [shape: f32[1,128], index: 2, kind: input, shape index: {}]
  %s3 = inlined_call_operand.hbm [shape: bf16[128,128], index: 3, kind: input, shape index: {}]
  %s4 = inlined_call_operand.vmem [shape: f32[1,128], index: 4, kind: input, shape index: {}]
  %s5 = inlined_call_operand.hbm [shape: bf16[128,128], index: 5, kind: input, shape index: {}]
  %s6 = inlined_call_operand.vmem [shape: f32[1,128], index: 6, kind: input, shape index: {}]
  %s7 = inlined_call_operand.hbm [shape: bf16[128,128], index: 7, kind: input, shape index: {}]
  %s8 = inlined_call_operand.vmem [shape: f32[1,128], index: 8, kind: input, shape index: {}]
  %s9 = inlined_call_operand.hbm [shape: bf16[128,128], index: 9, kind: input, shape index: {}]
  %s10 = inlined_call_operand.vmem [shape: f32[1,128], index: 10, kind: input, shape index: {}]
  %s11 = inlined_call_operand.hbm [shape: bf16[128,128], index: 11, kind: input, shape index: {}]
  %s12 = inlined_call_operand.vmem [shape: f32[1,128], index: 12, kind: input, shape index: {}]
  %s13 = inlined_call_operand.hbm [shape: bf16[2,128], index: 13, kind: output, shape index: {}]
  %s14 = sld [smem:[#allocation0]]
  $region90: #{tpu_custom_call.1} parent=0
    _
  %s16 = ssub.s32 1, %s14
  %s17 = scalar_select 0, %s16, %s14
  $region1: #{tpu_custom_call.1} parent=0
    #allocation2 [shape = 'u8[2048]{0}', space=vmem, size = 0x800, scoped, tag = 'input window, operand 0, single buffered']
    #allocation3 [shape = 's32[1]{0}', space=sflag, size = 0x4, scoped, tag = 'scoped memory for tpu_custom_call.1']
    #allocation4 [shape = 's32[1]{0}', space=sflag, size = 0x4, scoped, tag = 'scoped memory for tpu_custom_call.1']
    #allocation5 [shape = 'u8[65536]{0}', space=vmem, size = 0x10000, scoped, tag = 'input window, operand 1, single buffered']
    #allocation6 [shape = 's32[1]{0}', space=sflag, size = 0x4, scoped, tag = 'scoped memory for tpu_custom_call.1']
    #allocation7 [shape = 'u8[32768]{0}', space=vmem, size = 0x8000, scoped, tag = 'input window, operand 3, single buffered']
    #allocation8 [shape = 'u8[32768]{0}', space=vmem, size = 0x8000, scoped, tag = 'input window, operand 5, single buffered']
    #allocation9 [shape = 's32[1]{0}', space=sflag, size = 0x4, scoped, tag = 'scoped memory for tpu_custom_call.1']
    #allocation10 [shape = 'u8[32768]{0}', space=vmem, size = 0x8000, scoped, tag = 'input window, operand 7, single buffered']
    #allocation11 [shape = 'u8[32768]{0}', space=vmem, size = 0x8000, scoped, tag = 'input window, operand 9, single buffered']
    #allocation12 [shape = 's32[1]{0}', space=sflag, size = 0x4, scoped, tag = 'scoped memory for tpu_custom_call.1']
    #allocation13 [shape = 'u8[32768]{0}', space=vmem, size = 0x8000, scoped, tag = 'input window, operand 11, single buffered']
    #allocation14 [shape = 'u8[512]{0}', space=vmem, size = 0x400, scoped, tag = 'output window, operand 0, single buffered']
    %18 = vsyncpa [#allocation3], 0
    %19 = vsyncpa [#allocation6], 0
    %20 = vsyncpa [#allocation9], 0
    %21 = vsyncpa [#allocation12], 0
    %22 = vsyncpa [#allocation4], 0
    // Predicated region
    $region2: #{tpu_custom_call.1} parent=1 // pred_check
      _
    $region3: #{tpu_custom_call.1} parent=1 // pred_check_branch
      %24 = sbr.rel (0) target = $region5
    $region4: #{tpu_custom_call.1} parent=1 // pred_region
      %s26 = ssub.s32 64, 64
      %27 = vsyncadd [#allocation3], %s26
      %s29 = sshll.u32 [#allocation2], 4
      %s30 = int_to_ptr.vmem [resolvable:$true] %s29
      %32 = dma.hbm_to_vmem [thread:$0]  %s0, 64, %s30, [#allocation3]
    $region5: #{tpu_custom_call.1} parent=1 // pred_fallthru
      _
    // Predicated region
    $region6: #{tpu_custom_call.1} parent=1 // pred_check
      _
    $region7: #{tpu_custom_call.1} parent=1 // pred_check_branch
      %34 = sbr.rel (0) target = $region9
    $region8: #{tpu_custom_call.1} parent=1 // pred_region
      %s36 = ssub.s32 2048, 2048
      %37 = vsyncadd [#allocation6], %s36
      %s38 = sshll.u32 [#allocation5], 4
      %s39 = int_to_ptr.vmem [resolvable:$true] %s38
      %44 = dma.hbm_to_vmem [thread:$0]  %s1, 2048, %s39, [#allocation6], 64, 64, 4
    $region9: #{tpu_custom_call.1} parent=1 // pred_fallthru
      _
    // Predicated region
    $region10: #{tpu_custom_call.1} parent=1 // pred_check
      _
    $region11: #{tpu_custom_call.1} parent=1 // pred_check_branch
      %46 = sbr.rel (0) target = $region13
    $region12: #{tpu_custom_call.1} parent=1 // pred_region
      _
    $region13: #{tpu_custom_call.1} parent=1 // pred_fallthru
      _
    // Predicated region
    $region14: #{tpu_custom_call.1} parent=1 // pred_check
      _
    $region15: #{tpu_custom_call.1} parent=1 // pred_check_branch
      %48 = sbr.rel (0) target = $region17
    $region16: #{tpu_custom_call.1} parent=1 // pred_region
      %s50 = ssub.s32 1024, 1024
      %51 = vsyncadd [#allocation6], %s50
      %s52 = sshll.u32 [#allocation7], 4
      %s53 = int_to_ptr.vmem [resolvable:$true] %s52
      %58 = dma.hbm_to_vmem [thread:$0]  %s3, 1024, %s53, [#allocation6], 64, 64, 4
    $region17: #{tpu_custom_call.1} parent=1 // pred_fallthru
      _
    // Predicated region
    $region18: #{tpu_custom_call.1} parent=1 // pred_check
      _
    $region19: #{tpu_custom_call.1} parent=1 // pred_check_branch
      %60 = sbr.rel (0) target = $region21
    $region20: #{tpu_custom_call.1} parent=1 // pred_region
      _
    $region21: #{tpu_custom_call.1} parent=1 // pred_fallthru
      _
    // Predicated region
    $region22: #{tpu_custom_call.1} parent=1 // pred_check
      _
    $region23: #{tpu_custom_call.1} parent=1 // pred_check_branch
      %62 = sbr.rel (0) target = $region25
    $region24: #{tpu_custom_call.1} parent=1 // pred_region
      %s64 = ssub.s32 1024, 1024
      %65 = vsyncadd [#allocation9], %s64
      %s66 = sshll.u32 [#allocation8], 4
      %s67 = int_to_ptr.vmem [resolvable:$true] %s66
      %72 = dma.hbm_to_vmem [thread:$0]  %s5, 1024, %s67, [#allocation9], 64, 64, 4
    $region25: #{tpu_custom_call.1} parent=1 // pred_fallthru
      _
    // Predicated region
    $region26: #{tpu_custom_call.1} parent=1 // pred_check
      _
    $region27: #{tpu_custom_call.1} parent=1 // pred_check_branch
      %74 = sbr.rel (0) target = $region29
    $region28: #{tpu_custom_call.1} parent=1 // pred_region
      _
    $region29: #{tpu_custom_call.1} parent=1 // pred_fallthru
      _
    // Predicated region
    $region30: #{tpu_custom_call.1} parent=1 // pred_check
      _
    $region31: #{tpu_custom_call.1} parent=1 // pred_check_branch
      %76 = sbr.rel (0) target = $region33
    $region32: #{tpu_custom_call.1} parent=1 // pred_region
      %s78 = ssub.s32 1024, 1024
      %79 = vsyncadd [#allocation9], %s78
      %s80 = sshll.u32 [#allocation10], 4
      %s81 = int_to_ptr.vmem [resolvable:$true] %s80
      %86 = dma.hbm_to_vmem [thread:$0]  %s7, 1024, %s81, [#allocation9], 64, 64, 4
    $region33: #{tpu_custom_call.1} parent=1 // pred_fallthru
      _
    // Predicated region
    $region34: #{tpu_custom_call.1} parent=1 // pred_check
      _
    $region35: #{tpu_custom_call.1} parent=1 // pred_check_branch
      %88 = sbr.rel (0) target = $region37
    $region36: #{tpu_custom_call.1} parent=1 // pred_region
      _
    $region37: #{tpu_custom_call.1} parent=1 // pred_fallthru
      _
    // Predicated region
    $region38: #{tpu_custom_call.1} parent=1 // pred_check
      _
    $region39: #{tpu_custom_call.1} parent=1 // pred_check_branch
      %90 = sbr.rel (0) target = $region41
    $region40: #{tpu_custom_call.1} parent=1 // pred_region
      %s92 = ssub.s32 1024, 1024
      %93 = vsyncadd [#allocation12], %s92
      %s94 = sshll.u32 [#allocation11], 4
      %s95 = int_to_ptr.vmem [resolvable:$true] %s94
      %100 = dma.hbm_to_vmem [thread:$0]  %s9, 1024, %s95, [#allocation12], 64, 64, 4
    $region41: #{tpu_custom_call.1} parent=1 // pred_fallthru
      _
    // Predicated region
    $region42: #{tpu_custom_call.1} parent=1 // pred_check
      _
    $region43: #{tpu_custom_call.1} parent=1 // pred_check_branch
      %102 = sbr.rel (0) target = $region45
    $region44: #{tpu_custom_call.1} parent=1 // pred_region
      _
    $region45: #{tpu_custom_call.1} parent=1 // pred_fallthru
      _
    // Predicated region
    $region46: #{tpu_custom_call.1} parent=1 // pred_check
      _
    $region47: #{tpu_custom_call.1} parent=1 // pred_check_branch
      %104 = sbr.rel (0) target = $region49
    $region48: #{tpu_custom_call.1} parent=1 // pred_region
      %s106 = ssub.s32 1024, 1024
      %107 = vsyncadd [#allocation12], %s106
      %s108 = sshll.u32 [#allocation13], 4
      %s109 = int_to_ptr.vmem [resolvable:$true] %s108
      %114 = dma.hbm_to_vmem [thread:$0]  %s11, 1024, %s109, [#allocation12], 64, 64, 4
    $region49: #{tpu_custom_call.1} parent=1 // pred_fallthru
      _
    // Predicated region
    $region50: #{tpu_custom_call.1} parent=1 // pred_check
      _
    $region51: #{tpu_custom_call.1} parent=1 // pred_check_branch
      %116 = sbr.rel (0) target = $region53
    $region52: #{tpu_custom_call.1} parent=1 // pred_region
      _
    $region53: #{tpu_custom_call.1} parent=1 // pred_fallthru
      _
    // Predicated region
    $region54: #{tpu_custom_call.1} parent=1 // pred_check
      _
    $region55: #{tpu_custom_call.1} parent=1 // pred_check_branch
      %118 = sbr.rel (0) target = $region57
    $region56: #{tpu_custom_call.1} parent=1 // pred_region
      %119 = dma.done [#allocation3], 64
    $region57: #{tpu_custom_call.1} parent=1 // pred_fallthru
      _
    // Predicated region
    $region58: #{tpu_custom_call.1} parent=1 // pred_check
      _
    $region59: #{tpu_custom_call.1} parent=1 // pred_check_branch
      %121 = sbr.rel (0) target = $region61
    $region60: #{tpu_custom_call.1} parent=1 // pred_region
      %122 = dma.done [#allocation6], 2048
    $region61: #{tpu_custom_call.1} parent=1 // pred_fallthru
      _
    // Predicated region
    $region62: #{tpu_custom_call.1} parent=1 // pred_check
      _
    $region63: #{tpu_custom_call.1} parent=1 // pred_check_branch
      %124 = sbr.rel (0) target = $region65
    $region64: #{tpu_custom_call.1} parent=1 // pred_region
      %125 = dma.done [#allocation6], 1024
    $region65: #{tpu_custom_call.1} parent=1 // pred_fallthru
      _
    // Predicated region
    $region66: #{tpu_custom_call.1} parent=1 // pred_check
      _
    $region67: #{tpu_custom_call.1} parent=1 // pred_check_branch
      %127 = sbr.rel (0) target = $region69
    $region68: #{tpu_custom_call.1} parent=1 // pred_region
      %128 = dma.done [#allocation9], 1024
    $region69: #{tpu_custom_call.1} parent=1 // pred_fallthru
      _
    // Predicated region
    $region70: #{tpu_custom_call.1} parent=1 // pred_check
      _
    $region71: #{tpu_custom_call.1} parent=1 // pred_check_branch
      %130 = sbr.rel (0) target = $region73
    $region72: #{tpu_custom_call.1} parent=1 // pred_region
      %131 = dma.done [#allocation9], 1024
    $region73: #{tpu_custom_call.1} parent=1 // pred_fallthru
      _
    // Predicated region
    $region74: #{tpu_custom_call.1} parent=1 // pred_check
      _
    $region75: #{tpu_custom_call.1} parent=1 // pred_check_branch
      %133 = sbr.rel (0) target = $region77
    $region76: #{tpu_custom_call.1} parent=1 // pred_region
      %134 = dma.done [#allocation12], 1024
    $region77: #{tpu_custom_call.1} parent=1 // pred_fallthru
      _
    // Predicated region
    $region78: #{tpu_custom_call.1} parent=1 // pred_check
      _
    $region79: #{tpu_custom_call.1} parent=1 // pred_check_branch
      %136 = sbr.rel (0) target = $region81
    $region80: #{tpu_custom_call.1} parent=1 // pred_region
      %137 = dma.done [#allocation12], 1024
    $region81: #{tpu_custom_call.1} parent=1 // pred_fallthru
      _
    %v139 = vld [vmem:[#allocation2] sm:$0xf]
    %v142 = vunpack.c.l.s4 1983009808
    %v143 = vunpack.c.0.s8 %v142
    %v144 = vlaneseq
    %v145 = vshrl.u32 %v144, 7
    %v146 = vsub.s32 %v143, %v145
    %v147 = vrot.slane %v139, %v146
    %v148 = vcombine.high %v147, %v147
    %v151 = vpack.c.bf16 %v147, %v147
    %v152 = vpack.c.bf16 %v148, %v148
    %v153 = vld [vmem:[#allocation5] sm:$0xf]
    %v154 = vld [vmem:[#allocation5 + $0x4] sm:$0xf]
    %v155 = vld [vmem:[#allocation5 + $0x8] sm:$0xf]
    %v156 = vld [vmem:[#allocation5 + $0xc] sm:$0xf]
    %v157 = vld [vmem:[#allocation5 + $0x10] sm:$0xf]
    %v158 = vld [vmem:[#allocation5 + $0x14] sm:$0xf]
    %v159 = vld [vmem:[#allocation5 + $0x18] sm:$0xf]
    %v160 = vld [vmem:[#allocation5 + $0x1c] sm:$0xf]
    %v161 = vld [vmem:[#allocation5 + $0x20] sm:$0xf]
    %v162 = vld [vmem:[#allocation5 + $0x24] sm:$0xf]
    %v163 = vld [vmem:[#allocation5 + $0x28] sm:$0xf]
    %v164 = vld [vmem:[#allocation5 + $0x2c] sm:$0xf]
    %v165 = vld [vmem:[#allocation5 + $0x30] sm:$0xf]
    %v166 = vld [vmem:[#allocation5 + $0x34] sm:$0xf]
    %v167 = vld [vmem:[#allocation5 + $0x38] sm:$0xf]
    %v168 = vld [vmem:[#allocation5 + $0x3c] sm:$0xf]
    %v169 = vld [vmem:[#allocation5 + $0x40] sm:$0xf]
    %v170 = vld [vmem:[#allocation5 + $0x44] sm:$0xf]
    %v171 = vld [vmem:[#allocation5 + $0x48] sm:$0xf]
    %v172 = vld [vmem:[#allocation5 + $0x4c] sm:$0xf]
    %v173 = vld [vmem:[#allocation5 + $0x50] sm:$0xf]
    %v174 = vld [vmem:[#allocation5 + $0x54] sm:$0xf]
    %v175 = vld [vmem:[#allocation5 + $0x58] sm:$0xf]
    %v176 = vld [vmem:[#allocation5 + $0x5c] sm:$0xf]
    %v177 = vld [vmem:[#allocation5 + $0x60] sm:$0xf]
    %v178 = vld [vmem:[#allocation5 + $0x64] sm:$0xf]
    %v179 = vld [vmem:[#allocation5 + $0x68] sm:$0xf]
    %v180 = vld [vmem:[#allocation5 + $0x6c] sm:$0xf]
    %v181 = vld [vmem:[#allocation5 + $0x70] sm:$0xf]
    %v182 = vld [vmem:[#allocation5 + $0x74] sm:$0xf]
    %v183 = vld [vmem:[#allocation5 + $0x78] sm:$0xf]
    %v184 = vld [vmem:[#allocation5 + $0x7c] sm:$0xf]
    %v185 = vld [vmem:[%s2] sm:$0x1]
    %v187 = vlaneseq
    %v188 = vshrl.u32 %v187, 7
    %v189 = vsub.s32 0, %v188
    %v190 = vrot.slane %v185, %v189
    %v224 = vunpack.c.l.b16 %v153
    %v225 = vunpack.c.l.b16 %v154
    %v226 = vunpack.c.l.b16 %v155
    %v227 = vunpack.c.l.b16 %v156
    %v228 = vunpack.c.l.b16 %v157
    %v229 = vunpack.c.l.b16 %v158
    %v230 = vunpack.c.l.b16 %v159
    %v231 = vunpack.c.l.b16 %v160
    %v232 = vunpack.c.l.b16 %v161
    %v233 = vunpack.c.l.b16 %v162
    %v234 = vunpack.c.l.b16 %v163
    %v235 = vunpack.c.l.b16 %v164
    %v236 = vunpack.c.l.b16 %v165
    %v237 = vunpack.c.l.b16 %v166
    %v238 = vunpack.c.l.b16 %v167
    %v239 = vunpack.c.l.b16 %v168
    %v240 = vunpack.c.l.b16 %v169
    %v241 = vunpack.c.l.b16 %v170
    %v242 = vunpack.c.l.b16 %v171
    %v243 = vunpack.c.l.b16 %v172
    %v244 = vunpack.c.l.b16 %v173
    %v245 = vunpack.c.l.b16 %v174
    %v246 = vunpack.c.l.b16 %v175
    %v247 = vunpack.c.l.b16 %v176
    %v248 = vunpack.c.l.b16 %v177
    %v249 = vunpack.c.l.b16 %v178
    %v250 = vunpack.c.l.b16 %v179
    %v251 = vunpack.c.l.b16 %v180
    %v252 = vunpack.c.l.b16 %v181
    %v253 = vunpack.c.l.b16 %v182
    %v254 = vunpack.c.l.b16 %v183
    %v255 = vunpack.c.l.b16 %v184
    %v256 = vpack.c.b16 %v225, %v224
    %v257 = vpack.c.b16 %v227, %v226
    %v258 = vpack.c.b16 %v229, %v228
    %v259 = vpack.c.b16 %v231, %v230
    %v260 = vpack.c.b16 %v233, %v232
    %v261 = vpack.c.b16 %v235, %v234
    %v262 = vpack.c.b16 %v237, %v236
    %v263 = vpack.c.b16 %v239, %v238
    %v264 = vpack.c.b16 %v241, %v240
    %v265 = vpack.c.b16 %v243, %v242
    %v266 = vpack.c.b16 %v245, %v244
    %v267 = vpack.c.b16 %v247, %v246
    %v268 = vpack.c.b16 %v249, %v248
    %v269 = vpack.c.b16 %v251, %v250
    %v270 = vpack.c.b16 %v253, %v252
    %v271 = vpack.c.b16 %v255, %v254
    %288 = vmatprep.subr.bf16.mxu0 0
    %289 = vmatpush1.bf16.msra.mxu0 %v263
    %290 = vmatprep.subr.bf16.mxu0 0
    %291 = vmatpush1.bf16.msra.mxu0 %v262
    %292 = vmatprep.subr.bf16.mxu0 0
    %293 = vmatpush1.bf16.msra.mxu0 %v261
    %294 = vmatprep.subr.bf16.mxu0 0
    %295 = vmatpush1.bf16.msra.mxu0 %v260
    %296 = vmatprep.subr.bf16.mxu0 0
    %297 = vmatpush1.bf16.msra.mxu0 %v259
    %298 = vmatprep.subr.bf16.mxu0 0
    %299 = vmatpush1.bf16.msra.mxu0 %v258
    %300 = vmatprep.subr.bf16.mxu0 0
    %301 = vmatpush1.bf16.msra.mxu0 %v257
    %302 = vmatprep.subr.bf16.mxu0 0
    %303 = vmatpush1.bf16.msra.mxu0 %v256
    %304 = vmatprep.subr.bf16.mxu0 0
    %305 = vmatpush2.bf16.msra.mxu0 %v271
    %306 = vmatprep.subr.bf16.mxu0 0
    %307 = vmatpush2.bf16.msra.mxu0 %v270
    %308 = vmatprep.subr.bf16.mxu0 0
    %309 = vmatpush2.bf16.msra.mxu0 %v269
    %310 = vmatprep.subr.bf16.mxu0 0
    %311 = vmatpush2.bf16.msra.mxu0 %v268
    %312 = vmatprep.subr.bf16.mxu0 0
    %313 = vmatpush2.bf16.msra.mxu0 %v267
    %314 = vmatprep.subr.bf16.mxu0 0
    %315 = vmatpush2.bf16.msra.mxu0 %v266
    %316 = vmatprep.subr.bf16.mxu0 0
    %317 = vmatpush2.bf16.msra.mxu0 %v265
    %318 = vmatprep.subr.bf16.mxu0 0
    %319 = vmatpush2.bf16.msra.mxu0 %v264
    %320 = vmatprep.mubr.bf16.mxu0 %v152
    %321 = vmatmul.mubr.bf16.gmra.mxu0 %v151
    %v322 = vpop.f32.mrf.mxu0
    %v323 = vadd.f32 %v190, %v322
    %v324 = vpop.f32.mrf.mxu0
    %v325 = vpop.f32.mrf.mxu0
    %v326 = vpop.f32.mrf.mxu0
    %327 = vdwg.mxu0
    %v328 = vmax.f32 %v323, 0.0
    %v329 = vpack.c.bf16 %v328, %v328
    %v330 = vld [vmem:[#allocation7] sm:$0xf]
    %v331 = vld [vmem:[#allocation7 + $0x4] sm:$0xf]
    %v332 = vld [vmem:[#allocation7 + $0x8] sm:$0xf]
    %v333 = vld [vmem:[#allocation7 + $0xc] sm:$0xf]
    %v334 = vld [vmem:[#allocation7 + $0x10] sm:$0xf]
    %v335 = vld [vmem:[#allocation7 + $0x14] sm:$0xf]
    %v336 = vld [vmem:[#allocation7 + $0x18] sm:$0xf]
    %v337 = vld [vmem:[#allocation7 + $0x1c] sm:$0xf]
    %v338 = vld [vmem:[#allocation7 + $0x20] sm:$0xf]
    %v339 = vld [vmem:[#allocation7 + $0x24] sm:$0xf]
    %v340 = vld [vmem:[#allocation7 + $0x28] sm:$0xf]
    %v341 = vld [vmem:[#allocation7 + $0x2c] sm:$0xf]
    %v342 = vld [vmem:[#allocation7 + $0x30] sm:$0xf]
    %v343 = vld [vmem:[#allocation7 + $0x34] sm:$0xf]
    %v344 = vld [vmem:[#allocation7 + $0x38] sm:$0xf]
    %v345 = vld [vmem:[#allocation7 + $0x3c] sm:$0xf]
    %v346 = vld [vmem:[%s4] sm:$0x1]
    %v348 = vlaneseq
    %v349 = vshrl.u32 %v348, 7
    %v350 = vsub.s32 0, %v349
    %v351 = vrot.slane %v346, %v350
    %v369 = vunpack.c.l.b16 %v330
    %v370 = vunpack.c.l.b16 %v331
    %v371 = vunpack.c.l.b16 %v332
    %v372 = vunpack.c.l.b16 %v333
    %v373 = vunpack.c.l.b16 %v334
    %v374 = vunpack.c.l.b16 %v335
    %v375 = vunpack.c.l.b16 %v336
    %v376 = vunpack.c.l.b16 %v337
    %v377 = vunpack.c.l.b16 %v338
    %v378 = vunpack.c.l.b16 %v339
    %v379 = vunpack.c.l.b16 %v340
    %v380 = vunpack.c.l.b16 %v341
    %v381 = vunpack.c.l.b16 %v342
    %v382 = vunpack.c.l.b16 %v343
    %v383 = vunpack.c.l.b16 %v344
    %v384 = vunpack.c.l.b16 %v345
    %v385 = vpack.c.b16 %v370, %v369
    %v386 = vpack.c.b16 %v372, %v371
    %v387 = vpack.c.b16 %v374, %v373
    %v388 = vpack.c.b16 %v376, %v375
    %v389 = vpack.c.b16 %v378, %v377
    %v390 = vpack.c.b16 %v380, %v379
    %v391 = vpack.c.b16 %v382, %v381
    %v392 = vpack.c.b16 %v384, %v383
    %401 = vmatprep.subr.bf16.mxu0 0
    %402 = vmatpush1.bf16.msra.mxu0 %v392
    %403 = vmatprep.subr.bf16.mxu0 0
    %404 = vmatpush1.bf16.msra.mxu0 %v391
    %405 = vmatprep.subr.bf16.mxu0 0
    %406 = vmatpush1.bf16.msra.mxu0 %v390
    %407 = vmatprep.subr.bf16.mxu0 0
    %408 = vmatpush1.bf16.msra.mxu0 %v389
    %409 = vmatprep.subr.bf16.mxu0 0
    %410 = vmatpush1.bf16.msra.mxu0 %v388
    %411 = vmatprep.subr.bf16.mxu0 0
    %412 = vmatpush1.bf16.msra.mxu0 %v387
    %413 = vmatprep.subr.bf16.mxu0 0
    %414 = vmatpush1.bf16.msra.mxu0 %v386
    %415 = vmatprep.subr.bf16.mxu0 0
    %416 = vmatpush1.bf16.msra.mxu0 %v385
    %417 = vmatprep.subr.bf16.mxu0 0
    %418 = vmatpush2.bf16.msra.mxu0 0
    %419 = vmatprep.subr.bf16.mxu0 0
    %420 = vmatpush2.bf16.msra.mxu0 0
    %421 = vmatprep.subr.bf16.mxu0 0
    %422 = vmatpush2.bf16.msra.mxu0 0
    %423 = vmatprep.subr.bf16.mxu0 0
    %424 = vmatpush2.bf16.msra.mxu0 0
    %425 = vmatprep.subr.bf16.mxu0 0
    %426 = vmatpush2.bf16.msra.mxu0 0
    %427 = vmatprep.subr.bf16.mxu0 0
    %428 = vmatpush2.bf16.msra.mxu0 0
    %429 = vmatprep.subr.bf16.mxu0 0
    %430 = vmatpush2.bf16.msra.mxu0 0
    %431 = vmatprep.subr.bf16.mxu0 0
    %432 = vmatpush2.bf16.msra.mxu0 0
    %433 = vmatprep.mubr.bf16.mxu0 0
    %434 = vmatmul.mubr.bf16.gmra.mxu0 %v329
    %v435 = vpop.f32.mrf.mxu0
    %v436 = vadd.f32 %v351, %v435
    %v437 = vpop.f32.mrf.mxu0
    %v438 = vpop.f32.mrf.mxu0
    %v439 = vpop.f32.mrf.mxu0
    %440 = vdwg.mxu0
    %v441 = vmax.f32 %v436, 0.0
    %v442 = vpack.c.bf16 %v441, %v441
    %v443 = vld [vmem:[#allocation8] sm:$0xf]
    %v444 = vld [vmem:[#allocation8 + $0x4] sm:$0xf]
    %v445 = vld [vmem:[#allocation8 + $0x8] sm:$0xf]
    %v446 = vld [vmem:[#allocation8 + $0xc] sm:$0xf]
    %v447 = vld [vmem:[#allocation8 + $0x10] sm:$0xf]
    %v448 = vld [vmem:[#allocation8 + $0x14] sm:$0xf]
    %v449 = vld [vmem:[#allocation8 + $0x18] sm:$0xf]
    %v450 = vld [vmem:[#allocation8 + $0x1c] sm:$0xf]
    %v451 = vld [vmem:[#allocation8 + $0x20] sm:$0xf]
    %v452 = vld [vmem:[#allocation8 + $0x24] sm:$0xf]
    %v453 = vld [vmem:[#allocation8 + $0x28] sm:$0xf]
    %v454 = vld [vmem:[#allocation8 + $0x2c] sm:$0xf]
    %v455 = vld [vmem:[#allocation8 + $0x30] sm:$0xf]
    %v456 = vld [vmem:[#allocation8 + $0x34] sm:$0xf]
    %v457 = vld [vmem:[#allocation8 + $0x38] sm:$0xf]
    %v458 = vld [vmem:[#allocation8 + $0x3c] sm:$0xf]
    %v459 = vld [vmem:[%s6] sm:$0x1]
    %v461 = vlaneseq
    %v462 = vshrl.u32 %v461, 7
    %v463 = vsub.s32 0, %v462
    %v464 = vrot.slane %v459, %v463
    %v482 = vunpack.c.l.b16 %v443
    %v483 = vunpack.c.l.b16 %v444
    %v484 = vunpack.c.l.b16 %v445
    %v485 = vunpack.c.l.b16 %v446
    %v486 = vunpack.c.l.b16 %v447
    %v487 = vunpack.c.l.b16 %v448
    %v488 = vunpack.c.l.b16 %v449
    %v489 = vunpack.c.l.b16 %v450
    %v490 = vunpack.c.l.b16 %v451
    %v491 = vunpack.c.l.b16 %v452
    %v492 = vunpack.c.l.b16 %v453
    %v493 = vunpack.c.l.b16 %v454
    %v494 = vunpack.c.l.b16 %v455
    %v495 = vunpack.c.l.b16 %v456
    %v496 = vunpack.c.l.b16 %v457
    %v497 = vunpack.c.l.b16 %v458
    %v498 = vpack.c.b16 %v483, %v482
    %v499 = vpack.c.b16 %v485, %v484
    %v500 = vpack.c.b16 %v487, %v486
    %v501 = vpack.c.b16 %v489, %v488
    %v502 = vpack.c.b16 %v491, %v490
    %v503 = vpack.c.b16 %v493, %v492
    %v504 = vpack.c.b16 %v495, %v494
    %v505 = vpack.c.b16 %v497, %v496
    %514 = vmatprep.subr.bf16.mxu0 0
    %515 = vmatpush1.bf16.msra.mxu0 %v505
    %516 = vmatprep.subr.bf16.mxu0 0
    %517 = vmatpush1.bf16.msra.mxu0 %v504
    %518 = vmatprep.subr.bf16.mxu0 0
    %519 = vmatpush1.bf16.msra.mxu0 %v503
    %520 = vmatprep.subr.bf16.mxu0 0
    %521 = vmatpush1.bf16.msra.mxu0 %v502
    %522 = vmatprep.subr.bf16.mxu0 0
    %523 = vmatpush1.bf16.msra.mxu0 %v501
    %524 = vmatprep.subr.bf16.mxu0 0
    %525 = vmatpush1.bf16.msra.mxu0 %v500
    %526 = vmatprep.subr.bf16.mxu0 0
    %527 = vmatpush1.bf16.msra.mxu0 %v499
    %528 = vmatprep.subr.bf16.mxu0 0
    %529 = vmatpush1.bf16.msra.mxu0 %v498
    %530 = vmatprep.subr.bf16.mxu0 0
    %531 = vmatpush2.bf16.msra.mxu0 0
    %532 = vmatprep.subr.bf16.mxu0 0
    %533 = vmatpush2.bf16.msra.mxu0 0
    %534 = vmatprep.subr.bf16.mxu0 0
    %535 = vmatpush2.bf16.msra.mxu0 0
    %536 = vmatprep.subr.bf16.mxu0 0
    %537 = vmatpush2.bf16.msra.mxu0 0
    %538 = vmatprep.subr.bf16.mxu0 0
    %539 = vmatpush2.bf16.msra.mxu0 0
    %540 = vmatprep.subr.bf16.mxu0 0
    %541 = vmatpush2.bf16.msra.mxu0 0
    %542 = vmatprep.subr.bf16.mxu0 0
    %543 = vmatpush2.bf16.msra.mxu0 0
    %544 = vmatprep.subr.bf16.mxu0 0
    %545 = vmatpush2.bf16.msra.mxu0 0
    %546 = vmatprep.mubr.bf16.mxu0 0
    %547 = vmatmul.mubr.bf16.gmra.mxu0 %v442
    %v548 = vpop.f32.mrf.mxu0
    %v549 = vadd.f32 %v464, %v548
    %v550 = vpop.f32.mrf.mxu0
    %v551 = vpop.f32.mrf.mxu0
    %v552 = vpop.f32.mrf.mxu0
    %553 = vdwg.mxu0
    %v554 = vadd.f32 %v328, %v549
    %v555 = vmax.f32 %v554, 0.0
    %v556 = vpack.c.bf16 %v555, %v555
    %v557 = vld [vmem:[#allocation10] sm:$0xf]
    %v558 = vld [vmem:[#allocation10 + $0x4] sm:$0xf]
    %v559 = vld [vmem:[#allocation10 + $0x8] sm:$0xf]
    %v560 = vld [vmem:[#allocation10 + $0xc] sm:$0xf]
    %v561 = vld [vmem:[#allocation10 + $0x10] sm:$0xf]
    %v562 = vld [vmem:[#allocation10 + $0x14] sm:$0xf]
    %v563 = vld [vmem:[#allocation10 + $0x18] sm:$0xf]
    %v564 = vld [vmem:[#allocation10 + $0x1c] sm:$0xf]
    %v565 = vld [vmem:[#allocation10 + $0x20] sm:$0xf]
    %v566 = vld [vmem:[#allocation10 + $0x24] sm:$0xf]
    %v567 = vld [vmem:[#allocation10 + $0x28] sm:$0xf]
    %v568 = vld [vmem:[#allocation10 + $0x2c] sm:$0xf]
    %v569 = vld [vmem:[#allocation10 + $0x30] sm:$0xf]
    %v570 = vld [vmem:[#allocation10 + $0x34] sm:$0xf]
    %v571 = vld [vmem:[#allocation10 + $0x38] sm:$0xf]
    %v572 = vld [vmem:[#allocation10 + $0x3c] sm:$0xf]
    %v573 = vld [vmem:[%s8] sm:$0x1]
    %v575 = vlaneseq
    %v576 = vshrl.u32 %v575, 7
    %v577 = vsub.s32 0, %v576
    %v578 = vrot.slane %v573, %v577
    %v596 = vunpack.c.l.b16 %v557
    %v597 = vunpack.c.l.b16 %v558
    %v598 = vunpack.c.l.b16 %v559
    %v599 = vunpack.c.l.b16 %v560
    %v600 = vunpack.c.l.b16 %v561
    %v601 = vunpack.c.l.b16 %v562
    %v602 = vunpack.c.l.b16 %v563
    %v603 = vunpack.c.l.b16 %v564
    %v604 = vunpack.c.l.b16 %v565
    %v605 = vunpack.c.l.b16 %v566
    %v606 = vunpack.c.l.b16 %v567
    %v607 = vunpack.c.l.b16 %v568
    %v608 = vunpack.c.l.b16 %v569
    %v609 = vunpack.c.l.b16 %v570
    %v610 = vunpack.c.l.b16 %v571
    %v611 = vunpack.c.l.b16 %v572
    %v612 = vpack.c.b16 %v597, %v596
    %v613 = vpack.c.b16 %v599, %v598
    %v614 = vpack.c.b16 %v601, %v600
    %v615 = vpack.c.b16 %v603, %v602
    %v616 = vpack.c.b16 %v605, %v604
    %v617 = vpack.c.b16 %v607, %v606
    %v618 = vpack.c.b16 %v609, %v608
    %v619 = vpack.c.b16 %v611, %v610
    %628 = vmatprep.subr.bf16.mxu0 0
    %629 = vmatpush1.bf16.msra.mxu0 %v619
    %630 = vmatprep.subr.bf16.mxu0 0
    %631 = vmatpush1.bf16.msra.mxu0 %v618
    %632 = vmatprep.subr.bf16.mxu0 0
    %633 = vmatpush1.bf16.msra.mxu0 %v617
    %634 = vmatprep.subr.bf16.mxu0 0
    %635 = vmatpush1.bf16.msra.mxu0 %v616
    %636 = vmatprep.subr.bf16.mxu0 0
    %637 = vmatpush1.bf16.msra.mxu0 %v615
    %638 = vmatprep.subr.bf16.mxu0 0
    %639 = vmatpush1.bf16.msra.mxu0 %v614
    %640 = vmatprep.subr.bf16.mxu0 0
    %641 = vmatpush1.bf16.msra.mxu0 %v613
    %642 = vmatprep.subr.bf16.mxu0 0
    %643 = vmatpush1.bf16.msra.mxu0 %v612
    %644 = vmatprep.subr.bf16.mxu0 0
    %645 = vmatpush2.bf16.msra.mxu0 0
    %646 = vmatprep.subr.bf16.mxu0 0
    %647 = vmatpush2.bf16.msra.mxu0 0
    %648 = vmatprep.subr.bf16.mxu0 0
    %649 = vmatpush2.bf16.msra.mxu0 0
    %650 = vmatprep.subr.bf16.mxu0 0
    %651 = vmatpush2.bf16.msra.mxu0 0
    %652 = vmatprep.subr.bf16.mxu0 0
    %653 = vmatpush2.bf16.msra.mxu0 0
    %654 = vmatprep.subr.bf16.mxu0 0
    %655 = vmatpush2.bf16.msra.mxu0 0
    %656 = vmatprep.subr.bf16.mxu0 0
    %657 = vmatpush2.bf16.msra.mxu0 0
    %658 = vmatprep.subr.bf16.mxu0 0
    %659 = vmatpush2.bf16.msra.mxu0 0
    %660 = vmatprep.mubr.bf16.mxu0 0
    %661 = vmatmul.mubr.bf16.gmra.mxu0 %v556
    %v662 = vpop.f32.mrf.mxu0
    %v663 = vadd.f32 %v578, %v662
    %v664 = vpop.f32.mrf.mxu0
    %v665 = vpop.f32.mrf.mxu0
    %v666 = vpop.f32.mrf.mxu0
    %667 = vdwg.mxu0
    %v668 = vmax.f32 %v663, 0.0
    %v669 = vpack.c.bf16 %v668, %v668
    %v670 = vld [vmem:[#allocation11] sm:$0xf]
    %v671 = vld [vmem:[#allocation11 + $0x4] sm:$0xf]
    %v672 = vld [vmem:[#allocation11 + $0x8] sm:$0xf]
    %v673 = vld [vmem:[#allocation11 + $0xc] sm:$0xf]
    %v674 = vld [vmem:[#allocation11 + $0x10] sm:$0xf]
    %v675 = vld [vmem:[#allocation11 + $0x14] sm:$0xf]
    %v676 = vld [vmem:[#allocation11 + $0x18] sm:$0xf]
    %v677 = vld [vmem:[#allocation11 + $0x1c] sm:$0xf]
    %v678 = vld [vmem:[#allocation11 + $0x20] sm:$0xf]
    %v679 = vld [vmem:[#allocation11 + $0x24] sm:$0xf]
    %v680 = vld [vmem:[#allocation11 + $0x28] sm:$0xf]
    %v681 = vld [vmem:[#allocation11 + $0x2c] sm:$0xf]
    %v682 = vld [vmem:[#allocation11 + $0x30] sm:$0xf]
    %v683 = vld [vmem:[#allocation11 + $0x34] sm:$0xf]
    %v684 = vld [vmem:[#allocation11 + $0x38] sm:$0xf]
    %v685 = vld [vmem:[#allocation11 + $0x3c] sm:$0xf]
    %v686 = vld [vmem:[%s10] sm:$0x1]
    %v688 = vlaneseq
    %v689 = vshrl.u32 %v688, 7
    %v690 = vsub.s32 0, %v689
    %v691 = vrot.slane %v686, %v690
    %v709 = vunpack.c.l.b16 %v670
    %v710 = vunpack.c.l.b16 %v671
    %v711 = vunpack.c.l.b16 %v672
    %v712 = vunpack.c.l.b16 %v673
    %v713 = vunpack.c.l.b16 %v674
    %v714 = vunpack.c.l.b16 %v675
    %v715 = vunpack.c.l.b16 %v676
    %v716 = vunpack.c.l.b16 %v677
    %v717 = vunpack.c.l.b16 %v678
    %v718 = vunpack.c.l.b16 %v679
    %v719 = vunpack.c.l.b16 %v680
    %v720 = vunpack.c.l.b16 %v681
    %v721 = vunpack.c.l.b16 %v682
    %v722 = vunpack.c.l.b16 %v683
    %v723 = vunpack.c.l.b16 %v684
    %v724 = vunpack.c.l.b16 %v685
    %v725 = vpack.c.b16 %v710, %v709
    %v726 = vpack.c.b16 %v712, %v711
    %v727 = vpack.c.b16 %v714, %v713
    %v728 = vpack.c.b16 %v716, %v715
    %v729 = vpack.c.b16 %v718, %v717
    %v730 = vpack.c.b16 %v720, %v719
    %v731 = vpack.c.b16 %v722, %v721
    %v732 = vpack.c.b16 %v724, %v723
    %741 = vmatprep.subr.bf16.mxu0 0
    %742 = vmatpush1.bf16.msra.mxu0 %v732
    %743 = vmatprep.subr.bf16.mxu0 0
    %744 = vmatpush1.bf16.msra.mxu0 %v731
    %745 = vmatprep.subr.bf16.mxu0 0
    %746 = vmatpush1.bf16.msra.mxu0 %v730
    %747 = vmatprep.subr.bf16.mxu0 0
    %748 = vmatpush1.bf16.msra.mxu0 %v729
    %749 = vmatprep.subr.bf16.mxu0 0
    %750 = vmatpush1.bf16.msra.mxu0 %v728
    %751 = vmatprep.subr.bf16.mxu0 0
    %752 = vmatpush1.bf16.msra.mxu0 %v727
    %753 = vmatprep.subr.bf16.mxu0 0
    %754 = vmatpush1.bf16.msra.mxu0 %v726
    %755 = vmatprep.subr.bf16.mxu0 0
    %756 = vmatpush1.bf16.msra.mxu0 %v725
    %757 = vmatprep.subr.bf16.mxu0 0
    %758 = vmatpush2.bf16.msra.mxu0 0
    %759 = vmatprep.subr.bf16.mxu0 0
    %760 = vmatpush2.bf16.msra.mxu0 0
    %761 = vmatprep.subr.bf16.mxu0 0
    %762 = vmatpush2.bf16.msra.mxu0 0
    %763 = vmatprep.subr.bf16.mxu0 0
    %764 = vmatpush2.bf16.msra.mxu0 0
    %765 = vmatprep.subr.bf16.mxu0 0
    %766 = vmatpush2.bf16.msra.mxu0 0
    %767 = vmatprep.subr.bf16.mxu0 0
    %768 = vmatpush2.bf16.msra.mxu0 0
    %769 = vmatprep.subr.bf16.mxu0 0
    %770 = vmatpush2.bf16.msra.mxu0 0
    %771 = vmatprep.subr.bf16.mxu0 0
    %772 = vmatpush2.bf16.msra.mxu0 0
    %773 = vmatprep.mubr.bf16.mxu0 0
    %774 = vmatmul.mubr.bf16.gmra.mxu0 %v669
    %v775 = vpop.f32.mrf.mxu0
    %v776 = vadd.f32 %v691, %v775
    %v777 = vpop.f32.mrf.mxu0
    %v778 = vpop.f32.mrf.mxu0
    %v779 = vpop.f32.mrf.mxu0
    %780 = vdwg.mxu0
    %v781 = vadd.f32 %v555, %v776
    %v782 = vmax.f32 %v781, 0.0
    %v783 = vpack.c.bf16 %v782, %v782
    %v784 = vld [vmem:[#allocation13] sm:$0xf]
    %v785 = vld [vmem:[#allocation13 + $0x4] sm:$0xf]
    %v786 = vld [vmem:[#allocation13 + $0x8] sm:$0xf]
    %v787 = vld [vmem:[#allocation13 + $0xc] sm:$0xf]
    %v788 = vld [vmem:[#allocation13 + $0x10] sm:$0xf]
    %v789 = vld [vmem:[#allocation13 + $0x14] sm:$0xf]
    %v790 = vld [vmem:[#allocation13 + $0x18] sm:$0xf]
    %v791 = vld [vmem:[#allocation13 + $0x1c] sm:$0xf]
    %v792 = vld [vmem:[#allocation13 + $0x20] sm:$0xf]
    %v793 = vld [vmem:[#allocation13 + $0x24] sm:$0xf]
    %v794 = vld [vmem:[#allocation13 + $0x28] sm:$0xf]
    %v795 = vld [vmem:[#allocation13 + $0x2c] sm:$0xf]
    %v796 = vld [vmem:[#allocation13 + $0x30] sm:$0xf]
    %v797 = vld [vmem:[#allocation13 + $0x34] sm:$0xf]
    %v798 = vld [vmem:[#allocation13 + $0x38] sm:$0xf]
    %v799 = vld [vmem:[#allocation13 + $0x3c] sm:$0xf]
    %v800 = vld [vmem:[%s12] sm:$0x1]
    %v802 = vlaneseq
    %v803 = vshrl.u32 %v802, 7
    %v804 = vsub.s32 0, %v803
    %v805 = vrot.slane %v800, %v804
    %v823 = vunpack.c.l.b16 %v784
    %v824 = vunpack.c.l.b16 %v785
    %v825 = vunpack.c.l.b16 %v786
    %v826 = vunpack.c.l.b16 %v787
    %v827 = vunpack.c.l.b16 %v788
    %v828 = vunpack.c.l.b16 %v789
    %v829 = vunpack.c.l.b16 %v790
    %v830 = vunpack.c.l.b16 %v791
    %v831 = vunpack.c.l.b16 %v792
    %v832 = vunpack.c.l.b16 %v793
    %v833 = vunpack.c.l.b16 %v794
    %v834 = vunpack.c.l.b16 %v795
    %v835 = vunpack.c.l.b16 %v796
    %v836 = vunpack.c.l.b16 %v797
    %v837 = vunpack.c.l.b16 %v798
    %v838 = vunpack.c.l.b16 %v799
    %v839 = vpack.c.b16 %v824, %v823
    %v840 = vpack.c.b16 %v826, %v825
    %v841 = vpack.c.b16 %v828, %v827
    %v842 = vpack.c.b16 %v830, %v829
    %v843 = vpack.c.b16 %v832, %v831
    %v844 = vpack.c.b16 %v834, %v833
    %v845 = vpack.c.b16 %v836, %v835
    %v846 = vpack.c.b16 %v838, %v837
    %855 = vmatprep.subr.bf16.mxu0 0
    %856 = vmatpush1.bf16.msra.mxu0 %v846
    %857 = vmatprep.subr.bf16.mxu0 0
    %858 = vmatpush1.bf16.msra.mxu0 %v845
    %859 = vmatprep.subr.bf16.mxu0 0
    %860 = vmatpush1.bf16.msra.mxu0 %v844
    %861 = vmatprep.subr.bf16.mxu0 0
    %862 = vmatpush1.bf16.msra.mxu0 %v843
    %863 = vmatprep.subr.bf16.mxu0 0
    %864 = vmatpush1.bf16.msra.mxu0 %v842
    %865 = vmatprep.subr.bf16.mxu0 0
    %866 = vmatpush1.bf16.msra.mxu0 %v841
    %867 = vmatprep.subr.bf16.mxu0 0
    %868 = vmatpush1.bf16.msra.mxu0 %v840
    %869 = vmatprep.subr.bf16.mxu0 0
    %870 = vmatpush1.bf16.msra.mxu0 %v839
    %871 = vmatprep.subr.bf16.mxu0 0
    %872 = vmatpush2.bf16.msra.mxu0 0
    %873 = vmatprep.subr.bf16.mxu0 0
    %874 = vmatpush2.bf16.msra.mxu0 0
    %875 = vmatprep.subr.bf16.mxu0 0
    %876 = vmatpush2.bf16.msra.mxu0 0
    %877 = vmatprep.subr.bf16.mxu0 0
    %878 = vmatpush2.bf16.msra.mxu0 0
    %879 = vmatprep.subr.bf16.mxu0 0
    %880 = vmatpush2.bf16.msra.mxu0 0
    %881 = vmatprep.subr.bf16.mxu0 0
    %882 = vmatpush2.bf16.msra.mxu0 0
    %883 = vmatprep.subr.bf16.mxu0 0
    %884 = vmatpush2.bf16.msra.mxu0 0
    %885 = vmatprep.subr.bf16.mxu0 0
    %886 = vmatpush2.bf16.msra.mxu0 0
    %887 = vmatprep.mubr.bf16.mxu0 0
    %888 = vmatmul.mubr.bf16.gmra.mxu0 %v783
    %v889 = vpop.f32.mrf.mxu0
    %v890 = vadd.f32 %v805, %v889
    %v891 = vpop.f32.mrf.mxu0
    %v892 = vpop.f32.mrf.mxu0
    %v893 = vpop.f32.mrf.mxu0
    %894 = vdwg.mxu0
    %v895 = vpack.c.bf16 %v890, %v890
    %896 = vst [vmem:[#allocation14] sm:$0x1] %v895
    // Predicated region
    $region82: #{tpu_custom_call.1} parent=1 // pred_check
      _
    $region83: #{tpu_custom_call.1} parent=1 // pred_check_branch
      %898 = sbr.rel (0) target = $region85
    $region84: #{tpu_custom_call.1} parent=1 // pred_region
      %s900 = ssub.s32 16, 16
      %901 = vsyncadd [#allocation4], %s900
      %s903 = sshll.u32 [#allocation14], 4
      %s904 = int_to_ptr.vmem [resolvable:$true] %s903
      %906 = dma.vmem_to_hbm [thread:$0]  %s904, 16, %s13, [#allocation4]
    $region85: #{tpu_custom_call.1} parent=1 // pred_fallthru
      _
    // Predicated region
    $region86: #{tpu_custom_call.1} parent=1 // pred_check
      _
    $region87: #{tpu_custom_call.1} parent=1 // pred_check_branch
      %908 = sbr.rel (0) target = $region89
    $region88: #{tpu_custom_call.1} parent=1 // pred_region
      %909 = dma.done [#allocation4], 16
    $region89: #{tpu_custom_call.1} parent=1 // pred_fallthru
      _
    %910 = vsyncpa [#allocation3], 1
    %911 = vsyncpa [#allocation6], 1
    %912 = vsyncpa [#allocation9], 1
    %913 = vsyncpa [#allocation12], 1
    %914 = vsyncpa [#allocation4], 1

</llo_original>
